<compile_context>
chip_gen: v7x
topology: tpu7x:2x2x1
jax: 0.10.0
libtpu: 0.0.40
codegen_flags: <defaults>
</compile_context>

<pallas_src>
import functools

import jax
import jax.numpy as jnp
from jax.experimental import pallas as pl
from jax.experimental.pallas import tpu as pltpu


def _fused_bn_add_relu_conv_kernel(x_ref, r_ref, gb_ref, w_ref, o_ref, *, p_real):
    # x_ref, r_ref, o_ref : (N, C, Pp)   gb_ref : (C, 2)   w_ref : (C_out, C_in)
    x = x_ref[...].astype(jnp.float32)
    r = r_ref[...].astype(jnp.float32)
    gb = gb_ref[...].astype(jnp.float32)
    gamma = gb[:, 0:1][jnp.newaxis]           # (1, C, 1)
    beta = gb[:, 1:2][jnp.newaxis]            # (1, C, 1)

    n, c, pp = x.shape
    inv_p = 1.0 / float(n * p_real)           # true element count, not padded

    # BatchNorm2d training-mode batch statistics over (N, H*W), biased variance,
    # eps=1e-5.  Pad lanes of x are zero, so the mean sum already excludes them;
    # the variance sum masks them explicitly (d = -mean there otherwise).
    mean = jnp.sum(x, axis=2, keepdims=True)              # (N, C, 1) lane reduce
    mean = jnp.sum(mean, axis=0, keepdims=True) * inv_p   # (1, C, 1)
    d = x - mean
    lane = jax.lax.broadcasted_iota(jnp.int32, x.shape, dimension=2)
    d2 = jnp.where(lane < p_real, d * d, 0.0)
    var = jnp.sum(d2, axis=2, keepdims=True)              # (N, C, 1)
    var = jnp.sum(var, axis=0, keepdims=True) * inv_p     # (1, C, 1)
    scale = jax.lax.rsqrt(var + 1e-5) * gamma              # (1, C, 1)

    # Residual add + ReLU; normalize folded into one per-channel mul + adds.
    # Pad-lane garbage stays confined to pad lanes (the conv contracts over C
    # only) and is sliced off by the wrapper.
    y = jnp.maximum(r + d * scale + beta, 0.0)             # (N, C, Pp)

    # 1x1 conv, no bias: out[n, o, p] = sum_c W[o, c] * y[n, c, p] on the MXU.
    w = w_ref[...].astype(jnp.float32)
    if n == 1:
        out = jnp.dot(w, y[0], preferred_element_type=jnp.float32)[jnp.newaxis]
    else:
        out = jnp.einsum("oc,ncp->nop", w, y, preferred_element_type=jnp.float32)
    o_ref[...] = out.astype(o_ref.dtype)


@jax.jit
def fused_forward(x102, x89, gamma, beta, conv_w):
    """x102, x89: (N, C, H, W) float32; conv_w: (C_out, C_in, 1, 1)."""
    N, C, H, W = x102.shape
    C_out = conv_w.shape[0]
    P = H * W
    Pp = max(128, ((P + 127) // 128) * 128)   # lane-dense padded P

    x_p = x102.reshape(N, C, P)
    r_p = x89.reshape(N, C, P)
    if Pp != P:
        pad = ((0, 0), (0, 0), (0, Pp - P))
        x_p = jnp.pad(x_p, pad)
        r_p = jnp.pad(r_p, pad)

    gb = jnp.stack([gamma, beta], axis=1)      # (C, 2): one small DMA, one buffer
    w = conv_w.reshape(C_out, C)               # (C_out, C_in); no transpose needed

    # Alias the padded residual to the output buffer when shapes/dtypes match.
    alias = {1: 0} if (C_out == C and x89.dtype == x102.dtype) else {}

    vmem = pl.BlockSpec(memory_space=pltpu.MemorySpace.VMEM)
    out_p = pl.pallas_call(
        functools.partial(_fused_bn_add_relu_conv_kernel, p_real=P),
        out_shape=jax.ShapeDtypeStruct((N, C_out, Pp), x102.dtype),
        in_specs=[vmem, vmem, vmem, vmem],
        out_specs=vmem,
        input_output_aliases=alias,
    )(x_p, r_p, gb, w)

    return out_p[:, :, :P].reshape(N, C_out, H, W)
    # TODO(synk): BatchNorm running_mean/running_var momentum update is a
    # training-time state side-effect and is not materialized here.


def reference_forward(x102, x89, gamma, beta, conv_w):
    mean = jnp.mean(x102, axis=(0, 2, 3), keepdims=True)
    var = jnp.var(x102, axis=(0, 2, 3), keepdims=True)
    xn = (x102 - mean) * jax.lax.rsqrt(var + 1e-5)
    xn = xn * gamma[None, :, None, None] + beta[None, :, None, None]
    y = jnp.maximum(x89 + xn, 0.0)
    return jnp.einsum("nchw,oc->nohw", y, conv_w[:, :, 0, 0])


if __name__ == "__main__":
    C = 208
    N, H, W = 1, 14, 14

    key = jax.random.PRNGKey(0)
    k1, k2, k3, k4, k5 = jax.random.split(key, 5)

    x102 = jax.random.normal(k1, (N, C, H, W), dtype=jnp.float32)
    x89 = jax.random.normal(k2, (N, C, H, W), dtype=jnp.float32)

    # Deterministic parameter init (synthetic, not a checkpoint load).
    gamma = jax.random.uniform(k3, (C,), dtype=jnp.float32, minval=0.5, maxval=1.5)
    beta = 0.1 * jax.random.normal(k4, (C,), dtype=jnp.float32)
    conv_w = (1.0 / jnp.sqrt(C)) * jax.random.normal(k5, (C, C, 1, 1), dtype=jnp.float32)

    out = jax.block_until_ready(fused_forward(x102, x89, gamma, beta, conv_w))

    ref = reference_forward(x102, x89, gamma, beta, conv_w)
    assert out.shape == (N, C, H, W)
    assert jnp.allclose(out, ref, atol=1e-3, rtol=1e-3), "mismatch vs JAX reference"

    print("KERNEL_OK")
</pallas_src>

<mosaic_0001>
module attributes {stable_mosaic.version = 11 : i64} {
  func.func @_fused_bn_add_relu_conv_kernel(%arg0: memref<1x208x256xf32, #tpu.memory_space<vmem>>, %arg1: memref<1x208x256xf32, #tpu.memory_space<vmem>>, %arg2: memref<208x2xf32, #tpu.memory_space<vmem>>, %arg3: memref<208x208xf32, #tpu.memory_space<vmem>>, %arg4: memref<1x208x256xf32, #tpu.memory_space<vmem>>) attributes {dimension_semantics = [], scalar_prefetch = 0 : i64, scratch_operands = 0 : i64, tpu.core_type = #tpu.core_type<tc>} {
    %c0 = arith.constant 0 : index
    %c0_0 = arith.constant 0 : index
    %c0_1 = arith.constant 0 : index
    %0 = vector.load %arg0[%c0, %c0_0, %c0_1] : memref<1x208x256xf32, #tpu.memory_space<vmem>>, vector<1x208x256xf32>
    %c0_2 = arith.constant 0 : index
    %c0_3 = arith.constant 0 : index
    %c0_4 = arith.constant 0 : index
    %1 = vector.load %arg1[%c0_2, %c0_3, %c0_4] : memref<1x208x256xf32, #tpu.memory_space<vmem>>, vector<1x208x256xf32>
    %c0_5 = arith.constant 0 : index
    %c0_6 = arith.constant 0 : index
    %2 = vector.load %arg2[%c0_5, %c0_6] : memref<208x2xf32, #tpu.memory_space<vmem>>, vector<208x2xf32>
    %3 = vector.extract_strided_slice %2 {offsets = [0, 0], sizes = [208, 1], strides = [1, 1]} : vector<208x2xf32> to vector<208x1xf32>
    %4 = vector.shape_cast %3 : vector<208x1xf32> to vector<1x208x1xf32>
    %5 = vector.extract_strided_slice %2 {offsets = [0, 1], sizes = [208, 1], strides = [1, 1]} : vector<208x2xf32> to vector<208x1xf32>
    %6 = vector.shape_cast %5 : vector<208x1xf32> to vector<1x208x1xf32>
    %cst = arith.constant dense<0.000000e+00> : vector<1x208xf32>
    %7 = vector.multi_reduction <add>, %0, %cst [2] : vector<1x208x256xf32> to vector<1x208xf32>
    %8 = vector.shape_cast %7 : vector<1x208xf32> to vector<1x208x1xf32>
    %cst_7 = arith.constant dense<0.000000e+00> : vector<208x1xf32>
    %9 = vector.multi_reduction <add>, %8, %cst_7 [0] : vector<1x208x1xf32> to vector<208x1xf32>
    %10 = vector.shape_cast %9 : vector<208x1xf32> to vector<1x208x1xf32>
    %cst_8 = arith.constant 0.00510204071 : f32
    %11 = vector.broadcast %cst_8 : f32 to vector<1x208x1xf32>
    %12 = arith.mulf %10, %11 : vector<1x208x1xf32>
    %13 = vector.broadcast %12 : vector<1x208x1xf32> to vector<1x208x256xf32>
    %14 = arith.subf %0, %13 : vector<1x208x256xf32>
    %15 = tpu.iota {dimensions = array<i32: 2>} : vector<1x208x256xi32>
    %c196_i32 = arith.constant 196 : i32
    %16 = vector.broadcast %c196_i32 : i32 to vector<1x208x256xi32>
    %17 = arith.cmpi slt, %15, %16 : vector<1x208x256xi32>
    %18 = arith.mulf %14, %14 : vector<1x208x256xf32>
    %cst_9 = arith.constant 0.000000e+00 : f32
    %19 = vector.broadcast %cst_9 : f32 to vector<1x208x256xf32>
    %20 = arith.select %17, %18, %19 : vector<1x208x256xi1>, vector<1x208x256xf32>
    %cst_10 = arith.constant dense<0.000000e+00> : vector<1x208xf32>
    %21 = vector.multi_reduction <add>, %20, %cst_10 [2] : vector<1x208x256xf32> to vector<1x208xf32>
    %22 = vector.shape_cast %21 : vector<1x208xf32> to vector<1x208x1xf32>
    %cst_11 = arith.constant dense<0.000000e+00> : vector<208x1xf32>
    %23 = vector.multi_reduction <add>, %22, %cst_11 [0] : vector<1x208x1xf32> to vector<208x1xf32>
    %24 = vector.shape_cast %23 : vector<208x1xf32> to vector<1x208x1xf32>
    %cst_12 = arith.constant 0.00510204071 : f32
    %25 = vector.broadcast %cst_12 : f32 to vector<1x208x1xf32>
    %26 = arith.mulf %24, %25 : vector<1x208x1xf32>
    %cst_13 = arith.constant 9.99999974E-6 : f32
    %27 = vector.broadcast %cst_13 : f32 to vector<1x208x1xf32>
    %28 = arith.addf %26, %27 : vector<1x208x1xf32>
    %29 = math.rsqrt %28 : vector<1x208x1xf32>
    %30 = arith.mulf %29, %4 : vector<1x208x1xf32>
    %31 = vector.broadcast %30 : vector<1x208x1xf32> to vector<1x208x256xf32>
    %32 = arith.mulf %14, %31 : vector<1x208x256xf32>
    %33 = arith.addf %1, %32 : vector<1x208x256xf32>
    %34 = vector.broadcast %6 : vector<1x208x1xf32> to vector<1x208x256xf32>
    %35 = arith.addf %33, %34 : vector<1x208x256xf32>
    %cst_14 = arith.constant 0.000000e+00 : f32
    %36 = vector.broadcast %cst_14 : f32 to vector<1x208x256xf32>
    %37 = arith.maximumf %35, %36 : vector<1x208x256xf32>
    %c0_15 = arith.constant 0 : index
    %c0_16 = arith.constant 0 : index
    %38 = vector.load %arg3[%c0_15, %c0_16] : memref<208x208xf32, #tpu.memory_space<vmem>>, vector<208x208xf32>
    %39 = vector.shape_cast %37 : vector<1x208x256xf32> to vector<208x256xf32>
    %cst_17 = arith.constant dense<0.000000e+00> : vector<208x256xf32>
    %40 = tpu.matmul %38, %39, %cst_17 {dimension_numbers = #tpu.dot_dimension_numbers<[1], [0], [0], [1], [0, 0, 1, 1], [], []>} : vector<208x208xf32>, vector<208x256xf32>, vector<208x256xf32> -> vector<208x256xf32>
    %41 = vector.shape_cast %40 : vector<208x256xf32> to vector<1x208x256xf32>
    %c0_18 = arith.constant 0 : index
    %c0_19 = arith.constant 0 : index
    %c0_20 = arith.constant 0 : index
    %42 = vector.load %arg4[%c0_18, %c0_19, %c0_20] : memref<1x208x256xf32, #tpu.memory_space<vmem>>, vector<1x208x256xf32>
    tpu.vector_store %arg4[%c0_18, %c0_19, %c0_20], %41 {strides = array<i32>} : memref<1x208x256xf32, #tpu.memory_space<vmem>>, vector<1x208x256xf32>,
    return
  }
}

</mosaic_0001>

<llo_original>
// kernel: fused_forward.1
$region0: #{fused_forward.1}
  #allocation0 [shape = 'u32[]', space=smem, size = 0x4, offset = 0x4, fixed_abs, tag = 'smem constant byte address 0x4 - core index']
  #allocation1 [shape = 'u32[144,128]{1,0:T(1,128)}', space=vmem, size = 0x12000, scoped, tag = 'internal scratch']
  %s0 = inlined_call_operand.vmem [shape: f32[1,208,256], index: 0, kind: input, shape index: {}]
  %s1 = inlined_call_operand.vmem [shape: f32[1,208,256], index: 1, kind: input, shape index: {}, may-alias: {1,4}]
  %s2 = inlined_call_operand.vmem [shape: f32[208,2], index: 2, kind: input, shape index: {}]
  %s3 = inlined_call_operand.vmem [shape: f32[208,208], index: 3, kind: input, shape index: {}]
  %s4 = inlined_call_operand.vmem [shape: f32[1,208,256], index: 4, kind: output, shape index: {}, may-alias: {1,4}]
  %s5 = sld [smem:[#allocation0]]
  $region26: #{fused_forward.1} parent=0
    _
  %s7 = ssub.s32 1, %s5
  %s8 = scalar_select 0, %s7, %s5
  // Predicated region
  $region2: #{fused_forward.1} parent=0 // pred_check
    _
  $region3: #{fused_forward.1} parent=0 // pred_check_branch
    %10 = sbr.rel (0) target = $region5
  $region4: #{fused_forward.1} parent=0 // pred_region
    _
  $region5: #{fused_forward.1} parent=0 // pred_fallthru
    _
  // Predicated region
  $region6: #{fused_forward.1} parent=0 // pred_check
    _
  $region7: #{fused_forward.1} parent=0 // pred_check_branch
    %12 = sbr.rel (0) target = $region9
  $region8: #{fused_forward.1} parent=0 // pred_region
    _
  $region9: #{fused_forward.1} parent=0 // pred_fallthru
    _
  // Predicated region
  $region10: #{fused_forward.1} parent=0 // pred_check
    _
  $region11: #{fused_forward.1} parent=0 // pred_check_branch
    %14 = sbr.rel (0) target = $region13
  $region12: #{fused_forward.1} parent=0 // pred_region
    _
  $region13: #{fused_forward.1} parent=0 // pred_fallthru
    _
  // Predicated region
  $region14: #{fused_forward.1} parent=0 // pred_check
    _
  $region15: #{fused_forward.1} parent=0 // pred_check_branch
    %16 = sbr.rel (0) target = $region17
  $region16: #{fused_forward.1} parent=0 // pred_region
    _
  $region17: #{fused_forward.1} parent=0 // pred_fallthru
    _
  %v17 = vld [vmem:[%s0] sm:$0xff]
  %v18 = vld [vmem:[%s0 + $0x8] sm:$0xff]
  %v19 = vld [vmem:[%s0 + $0x10] sm:$0xff]
  %v20 = vld [vmem:[%s0 + $0x18] sm:$0xff]
  %v21 = vld [vmem:[%s0 + $0x20] sm:$0xff]
  %v22 = vld [vmem:[%s0 + $0x28] sm:$0xff]
  %v23 = vld [vmem:[%s0 + $0x30] sm:$0xff]
  %v24 = vld [vmem:[%s0 + $0x38] sm:$0xff]
  %v25 = vld [vmem:[%s0 + $0x40] sm:$0xff]
  %v26 = vld [vmem:[%s0 + $0x48] sm:$0xff]
  %v27 = vld [vmem:[%s0 + $0x50] sm:$0xff]
  %v28 = vld [vmem:[%s0 + $0x58] sm:$0xff]
  %v29 = vld [vmem:[%s0 + $0x60] sm:$0xff]
  %v30 = vld [vmem:[%s0 + $0x68] sm:$0xff]
  %v31 = vld [vmem:[%s0 + $0x70] sm:$0xff]
  %v32 = vld [vmem:[%s0 + $0x78] sm:$0xff]
  %v33 = vld [vmem:[%s0 + $0x80] sm:$0xff]
  %v34 = vld [vmem:[%s0 + $0x88] sm:$0xff]
  %v35 = vld [vmem:[%s0 + $0x90] sm:$0xff]
  %v36 = vld [vmem:[%s0 + $0x98] sm:$0xff]
  %v37 = vld [vmem:[%s0 + $0xa0] sm:$0xff]
  %v38 = vld [vmem:[%s0 + $0xa8] sm:$0xff]
  %v39 = vld [vmem:[%s0 + $0xb0] sm:$0xff]
  %v40 = vld [vmem:[%s0 + $0xb8] sm:$0xff]
  %v41 = vld [vmem:[%s0 + $0xc0] sm:$0xff]
  %v42 = vld [vmem:[%s0 + $0xc8] sm:$0xff]
  %v43 = vld [vmem:[%s0 + $0xd0] sm:$0xff]
  %v44 = vld [vmem:[%s0 + $0xd8] sm:$0xff]
  %v45 = vld [vmem:[%s0 + $0xe0] sm:$0xff]
  %v46 = vld [vmem:[%s0 + $0xe8] sm:$0xff]
  %v47 = vld [vmem:[%s0 + $0xf0] sm:$0xff]
  %v48 = vld [vmem:[%s0 + $0xf8] sm:$0xff]
  %v49 = vld [vmem:[%s0 + $0x100] sm:$0xff]
  %v50 = vld [vmem:[%s0 + $0x108] sm:$0xff]
  %v51 = vld [vmem:[%s0 + $0x110] sm:$0xff]
  %v52 = vld [vmem:[%s0 + $0x118] sm:$0xff]
  %v53 = vld [vmem:[%s0 + $0x120] sm:$0xff]
  %v54 = vld [vmem:[%s0 + $0x128] sm:$0xff]
  %v55 = vld [vmem:[%s0 + $0x130] sm:$0xff]
  %v56 = vld [vmem:[%s0 + $0x138] sm:$0xff]
  %v57 = vld [vmem:[%s0 + $0x140] sm:$0xff]
  %v58 = vld [vmem:[%s0 + $0x148] sm:$0xff]
  %v59 = vld [vmem:[%s0 + $0x150] sm:$0xff]
  %v60 = vld [vmem:[%s0 + $0x158] sm:$0xff]
  %v61 = vld [vmem:[%s0 + $0x160] sm:$0xff]
  %v62 = vld [vmem:[%s0 + $0x168] sm:$0xff]
  %v63 = vld [vmem:[%s0 + $0x170] sm:$0xff]
  %v64 = vld [vmem:[%s0 + $0x178] sm:$0xff]
  %v65 = vld [vmem:[%s0 + $0x180] sm:$0xff]
  %v66 = vld [vmem:[%s0 + $0x188] sm:$0xff]
  %v67 = vld [vmem:[%s0 + $0x190] sm:$0xff]
  %v68 = vld [vmem:[%s0 + $0x198] sm:$0xff]
  %v69 = vld [vmem:[%s1] sm:$0xff]
  %v70 = vld [vmem:[%s1 + $0x8] sm:$0xff]
  %v71 = vld [vmem:[%s1 + $0x10] sm:$0xff]
  %v72 = vld [vmem:[%s1 + $0x18] sm:$0xff]
  %v73 = vld [vmem:[%s1 + $0x20] sm:$0xff]
  %v74 = vld [vmem:[%s1 + $0x28] sm:$0xff]
  %v75 = vld [vmem:[%s1 + $0x30] sm:$0xff]
  %v76 = vld [vmem:[%s1 + $0x38] sm:$0xff]
  %v77 = vld [vmem:[%s1 + $0x40] sm:$0xff]
  %v78 = vld [vmem:[%s1 + $0x48] sm:$0xff]
  %v79 = vld [vmem:[%s1 + $0x50] sm:$0xff]
  %v80 = vld [vmem:[%s1 + $0x58] sm:$0xff]
  %v81 = vld [vmem:[%s1 + $0x60] sm:$0xff]
  %v82 = vld [vmem:[%s1 + $0x68] sm:$0xff]
  %v83 = vld [vmem:[%s1 + $0x70] sm:$0xff]
  %v84 = vld [vmem:[%s1 + $0x78] sm:$0xff]
  %v85 = vld [vmem:[%s1 + $0x80] sm:$0xff]
  %v86 = vld [vmem:[%s1 + $0x88] sm:$0xff]
  %v87 = vld [vmem:[%s1 + $0x90] sm:$0xff]
  %v88 = vld [vmem:[%s1 + $0x98] sm:$0xff]
  %v89 = vld [vmem:[%s1 + $0xa0] sm:$0xff]
  %v90 = vld [vmem:[%s1 + $0xa8] sm:$0xff]
  %v91 = vld [vmem:[%s1 + $0xb0] sm:$0xff]
  %v92 = vld [vmem:[%s1 + $0xb8] sm:$0xff]
  %v93 = vld [vmem:[%s1 + $0xc0] sm:$0xff]
  %v94 = vld [vmem:[%s1 + $0xc8] sm:$0xff]
  %v95 = vld [vmem:[%s1 + $0xd0] sm:$0xff]
  %v96 = vld [vmem:[%s1 + $0xd8] sm:$0xff]
  %v97 = vld [vmem:[%s1 + $0xe0] sm:$0xff]
  %v98 = vld [vmem:[%s1 + $0xe8] sm:$0xff]
  %v99 = vld [vmem:[%s1 + $0xf0] sm:$0xff]
  %v100 = vld [vmem:[%s1 + $0xf8] sm:$0xff]
  %v101 = vld [vmem:[%s1 + $0x100] sm:$0xff]
  %v102 = vld [vmem:[%s1 + $0x108] sm:$0xff]
  %v103 = vld [vmem:[%s1 + $0x110] sm:$0xff]
  %v104 = vld [vmem:[%s1 + $0x118] sm:$0xff]
  %v105 = vld [vmem:[%s1 + $0x120] sm:$0xff]
  %v106 = vld [vmem:[%s1 + $0x128] sm:$0xff]
  %v107 = vld [vmem:[%s1 + $0x130] sm:$0xff]
  %v108 = vld [vmem:[%s1 + $0x138] sm:$0xff]
  %v109 = vld [vmem:[%s1 + $0x140] sm:$0xff]
  %v110 = vld [vmem:[%s1 + $0x148] sm:$0xff]
  %v111 = vld [vmem:[%s1 + $0x150] sm:$0xff]
  %v112 = vld [vmem:[%s1 + $0x158] sm:$0xff]
  %v113 = vld [vmem:[%s1 + $0x160] sm:$0xff]
  %v114 = vld [vmem:[%s1 + $0x168] sm:$0xff]
  %v115 = vld [vmem:[%s1 + $0x170] sm:$0xff]
  %v116 = vld [vmem:[%s1 + $0x178] sm:$0xff]
  %v117 = vld [vmem:[%s1 + $0x180] sm:$0xff]
  %v118 = vld [vmem:[%s1 + $0x188] sm:$0xff]
  %v119 = vld [vmem:[%s1 + $0x190] sm:$0xff]
  %v120 = vld [vmem:[%s1 + $0x198] sm:$0xff]
  %v121 = vld [vmem:[%s2] sm:$0xff]
  %v122 = vld [vmem:[%s2 + $0x8] sm:$0xff]
  %v123 = vld [vmem:[%s2 + $0x10] sm:$0xff]
  %v124 = vld [vmem:[%s2 + $0x18] sm:$0xff]
  %v125 = vld [vmem:[%s2 + $0x20] sm:$0xff]
  %v126 = vld [vmem:[%s2 + $0x28] sm:$0xff]
  %v127 = vld [vmem:[%s2 + $0x30] sm:$0xff]
  %v128 = vld [vmem:[%s2 + $0x38] sm:$0xff]
  %v129 = vld [vmem:[%s2 + $0x40] sm:$0xff]
  %v130 = vld [vmem:[%s2 + $0x48] sm:$0xff]
  %v131 = vld [vmem:[%s2 + $0x50] sm:$0xff]
  %v132 = vld [vmem:[%s2 + $0x58] sm:$0xff]
  %v133 = vld [vmem:[%s2 + $0x60] sm:$0xff]
  %v134 = vld [vmem:[%s2 + $0x68] sm:$0xff]
  %v135 = vld [vmem:[%s2 + $0x70] sm:$0xff]
  %v136 = vld [vmem:[%s2 + $0x78] sm:$0xff]
  %v137 = vld [vmem:[%s2 + $0x80] sm:$0xff]
  %v138 = vld [vmem:[%s2 + $0x88] sm:$0xff]
  %v139 = vld [vmem:[%s2 + $0x90] sm:$0xff]
  %v140 = vld [vmem:[%s2 + $0x98] sm:$0xff]
  %v141 = vld [vmem:[%s2 + $0xa0] sm:$0xff]
  %v142 = vld [vmem:[%s2 + $0xa8] sm:$0xff]
  %v143 = vld [vmem:[%s2 + $0xb0] sm:$0xff]
  %v144 = vld [vmem:[%s2 + $0xb8] sm:$0xff]
  %v145 = vld [vmem:[%s2 + $0xc0] sm:$0xff]
  %v146 = vld [vmem:[%s2 + $0xc8] sm:$0xff]
  %v147 = vadd.f32 %v17, %v18
  %148 = vadd.xlane.f32.xlu0 %v147
  %v149 = vpop.xlane.xlu0 %148
  %v150 = vadd.f32 %v19, %v20
  %151 = vadd.xlane.f32.xlu0 %v150
  %v152 = vpop.xlane.xlu0 %151
  %v153 = vadd.f32 %v21, %v22
  %154 = vadd.xlane.f32.xlu0 %v153
  %v155 = vpop.xlane.xlu0 %154
  %v156 = vadd.f32 %v23, %v24
  %157 = vadd.xlane.f32.xlu0 %v156
  %v158 = vpop.xlane.xlu0 %157
  %v159 = vadd.f32 %v25, %v26
  %160 = vadd.xlane.f32.xlu0 %v159
  %v161 = vpop.xlane.xlu0 %160
  %v162 = vadd.f32 %v27, %v28
  %163 = vadd.xlane.f32.xlu0 %v162
  %v164 = vpop.xlane.xlu0 %163
  %v165 = vadd.f32 %v29, %v30
  %166 = vadd.xlane.f32.xlu0 %v165
  %v167 = vpop.xlane.xlu0 %166
  %v168 = vadd.f32 %v31, %v32
  %169 = vadd.xlane.f32.xlu0 %v168
  %v170 = vpop.xlane.xlu0 %169
  %v171 = vadd.f32 %v33, %v34
  %172 = vadd.xlane.f32.xlu0 %v171
  %v173 = vpop.xlane.xlu0 %172
  %v174 = vadd.f32 %v35, %v36
  %175 = vadd.xlane.f32.xlu0 %v174
  %v176 = vpop.xlane.xlu0 %175
  %v177 = vadd.f32 %v37, %v38
  %178 = vadd.xlane.f32.xlu0 %v177
  %v179 = vpop.xlane.xlu0 %178
  %v180 = vadd.f32 %v39, %v40
  %181 = vadd.xlane.f32.xlu0 %v180
  %v182 = vpop.xlane.xlu0 %181
  %v183 = vadd.f32 %v41, %v42
  %184 = vadd.xlane.f32.xlu0 %v183
  %v185 = vpop.xlane.xlu0 %184
  %v186 = vadd.f32 %v43, %v44
  %187 = vadd.xlane.f32.xlu0 %v186
  %v188 = vpop.xlane.xlu0 %187
  %v189 = vadd.f32 %v45, %v46
  %190 = vadd.xlane.f32.xlu0 %v189
  %v191 = vpop.xlane.xlu0 %190
  %v192 = vadd.f32 %v47, %v48
  %193 = vadd.xlane.f32.xlu0 %v192
  %v194 = vpop.xlane.xlu0 %193
  %v195 = vadd.f32 %v49, %v50
  %196 = vadd.xlane.f32.xlu0 %v195
  %v197 = vpop.xlane.xlu0 %196
  %v198 = vadd.f32 %v51, %v52
  %199 = vadd.xlane.f32.xlu0 %v198
  %v200 = vpop.xlane.xlu0 %199
  %v201 = vadd.f32 %v53, %v54
  %202 = vadd.xlane.f32.xlu0 %v201
  %v203 = vpop.xlane.xlu0 %202
  %v204 = vadd.f32 %v55, %v56
  %205 = vadd.xlane.f32.xlu0 %v204
  %v206 = vpop.xlane.xlu0 %205
  %v207 = vadd.f32 %v57, %v58
  %208 = vadd.xlane.f32.xlu0 %v207
  %v209 = vpop.xlane.xlu0 %208
  %v210 = vadd.f32 %v59, %v60
  %211 = vadd.xlane.f32.xlu0 %v210
  %v212 = vpop.xlane.xlu0 %211
  %v213 = vadd.f32 %v61, %v62
  %214 = vadd.xlane.f32.xlu0 %v213
  %v215 = vpop.xlane.xlu0 %214
  %v216 = vadd.f32 %v63, %v64
  %217 = vadd.xlane.f32.xlu0 %v216
  %v218 = vpop.xlane.xlu0 %217
  %v219 = vadd.f32 %v65, %v66
  %220 = vadd.xlane.f32.xlu0 %v219
  %v221 = vpop.xlane.xlu0 %220
  %v222 = vadd.f32 %v67, %v68
  %223 = vadd.xlane.f32.xlu0 %v222
  %v224 = vpop.xlane.xlu0 %223
  %v225 = vadd.f32 %v149, 0.0
  %v226 = vadd.f32 %v152, 0.0
  %v227 = vadd.f32 %v155, 0.0
  %v228 = vadd.f32 %v158, 0.0
  %v229 = vadd.f32 %v161, 0.0
  %v230 = vadd.f32 %v164, 0.0
  %v231 = vadd.f32 %v167, 0.0
  %v232 = vadd.f32 %v170, 0.0
  %v233 = vadd.f32 %v173, 0.0
  %v234 = vadd.f32 %v176, 0.0
  %v235 = vadd.f32 %v179, 0.0
  %v236 = vadd.f32 %v182, 0.0
  %v237 = vadd.f32 %v185, 0.0
  %v238 = vadd.f32 %v188, 0.0
  %v239 = vadd.f32 %v191, 0.0
  %v240 = vadd.f32 %v194, 0.0
  %v241 = vadd.f32 %v197, 0.0
  %v242 = vadd.f32 %v200, 0.0
  %v243 = vadd.f32 %v203, 0.0
  %v244 = vadd.f32 %v206, 0.0
  %v245 = vadd.f32 %v209, 0.0
  %v246 = vadd.f32 %v212, 0.0
  %v247 = vadd.f32 %v215, 0.0
  %v248 = vadd.f32 %v218, 0.0
  %v249 = vadd.f32 %v221, 0.0
  %v250 = vadd.f32 %v224, 0.0
  %v251 = vmul.f32 %v225, 0.0051020407
  %v252 = vmul.f32 %v226, 0.0051020407
  %v253 = vmul.f32 %v227, 0.0051020407
  %v254 = vmul.f32 %v228, 0.0051020407
  %v255 = vmul.f32 %v229, 0.0051020407
  %v256 = vmul.f32 %v230, 0.0051020407
  %v257 = vmul.f32 %v231, 0.0051020407
  %v258 = vmul.f32 %v232, 0.0051020407
  %v259 = vmul.f32 %v233, 0.0051020407
  %v260 = vmul.f32 %v234, 0.0051020407
  %v261 = vmul.f32 %v235, 0.0051020407
  %v262 = vmul.f32 %v236, 0.0051020407
  %v263 = vmul.f32 %v237, 0.0051020407
  %v264 = vmul.f32 %v238, 0.0051020407
  %v265 = vmul.f32 %v239, 0.0051020407
  %v266 = vmul.f32 %v240, 0.0051020407
  %v267 = vmul.f32 %v241, 0.0051020407
  %v268 = vmul.f32 %v242, 0.0051020407
  %v269 = vmul.f32 %v243, 0.0051020407
  %v270 = vmul.f32 %v244, 0.0051020407
  %v271 = vmul.f32 %v245, 0.0051020407
  %v272 = vmul.f32 %v246, 0.0051020407
  %v273 = vmul.f32 %v247, 0.0051020407
  %v274 = vmul.f32 %v248, 0.0051020407
  %v275 = vmul.f32 %v249, 0.0051020407
  %v276 = vmul.f32 %v250, 0.0051020407
  %v277 = vsub.f32 %v17, %v251
  %v278 = vsub.f32 %v18, %v251
  %v279 = vsub.f32 %v19, %v252
  %v280 = vsub.f32 %v20, %v252
  %v281 = vsub.f32 %v21, %v253
  %v282 = vsub.f32 %v22, %v253
  %v283 = vsub.f32 %v23, %v254
  %v284 = vsub.f32 %v24, %v254
  %v285 = vsub.f32 %v25, %v255
  %v286 = vsub.f32 %v26, %v255
  %v287 = vsub.f32 %v27, %v256
  %v288 = vsub.f32 %v28, %v256
  %v289 = vsub.f32 %v29, %v257
  %v290 = vsub.f32 %v30, %v257
  %v291 = vsub.f32 %v31, %v258
  %v292 = vsub.f32 %v32, %v258
  %v293 = vsub.f32 %v33, %v259
  %v294 = vsub.f32 %v34, %v259
  %v295 = vsub.f32 %v35, %v260
  %v296 = vsub.f32 %v36, %v260
  %v297 = vsub.f32 %v37, %v261
  %v298 = vsub.f32 %v38, %v261
  %v299 = vsub.f32 %v39, %v262
  %v300 = vsub.f32 %v40, %v262
  %v301 = vsub.f32 %v41, %v263
  %v302 = vsub.f32 %v42, %v263
  %v303 = vsub.f32 %v43, %v264
  %v304 = vsub.f32 %v44, %v264
  %v305 = vsub.f32 %v45, %v265
  %v306 = vsub.f32 %v46, %v265
  %v307 = vsub.f32 %v47, %v266
  %v308 = vsub.f32 %v48, %v266
  %v309 = vsub.f32 %v49, %v267
  %v310 = vsub.f32 %v50, %v267
  %v311 = vsub.f32 %v51, %v268
  %v312 = vsub.f32 %v52, %v268
  %v313 = vsub.f32 %v53, %v269
  %v314 = vsub.f32 %v54, %v269
  %v315 = vsub.f32 %v55, %v270
  %v316 = vsub.f32 %v56, %v270
  %v317 = vsub.f32 %v57, %v271
  %v318 = vsub.f32 %v58, %v271
  %v319 = vsub.f32 %v59, %v272
  %v320 = vsub.f32 %v60, %v272
  %v321 = vsub.f32 %v61, %v273
  %v322 = vsub.f32 %v62, %v273
  %v323 = vsub.f32 %v63, %v274
  %v324 = vsub.f32 %v64, %v274
  %v325 = vsub.f32 %v65, %v275
  %v326 = vsub.f32 %v66, %v275
  %v327 = vsub.f32 %v67, %v276
  %v328 = vsub.f32 %v68, %v276
  %v329 = vlaneseq
  %v330 = vand.u32 %v329, 127
  %v331 = vadd.s32 %v330, 128
  %vm332 = vcmp.lt.s32.totalorder %v330, 196
  %vm333 = vcmp.lt.s32.totalorder %v331, 196
  %v334 = vmul.f32 %v277, %v277
  %v335 = vmul.f32 %v278, %v278
  %v336 = vmul.f32 %v279, %v279
  %v337 = vmul.f32 %v280, %v280
  %v338 = vmul.f32 %v281, %v281
  %v339 = vmul.f32 %v282, %v282
  %v340 = vmul.f32 %v283, %v283
  %v341 = vmul.f32 %v284, %v284
  %v342 = vmul.f32 %v285, %v285
  %v343 = vmul.f32 %v286, %v286
  %v344 = vmul.f32 %v287, %v287
  %v345 = vmul.f32 %v288, %v288
  %v346 = vmul.f32 %v289, %v289
  %v347 = vmul.f32 %v290, %v290
  %v348 = vmul.f32 %v291, %v291
  %v349 = vmul.f32 %v292, %v292
  %v350 = vmul.f32 %v293, %v293
  %v351 = vmul.f32 %v294, %v294
  %v352 = vmul.f32 %v295, %v295
  %v353 = vmul.f32 %v296, %v296
  %v354 = vmul.f32 %v297, %v297
  %v355 = vmul.f32 %v298, %v298
  %v356 = vmul.f32 %v299, %v299
  %v357 = vmul.f32 %v300, %v300
  %v358 = vmul.f32 %v301, %v301
  %v359 = vmul.f32 %v302, %v302
  %v360 = vmul.f32 %v303, %v303
  %v361 = vmul.f32 %v304, %v304
  %v362 = vmul.f32 %v305, %v305
  %v363 = vmul.f32 %v306, %v306
  %v364 = vmul.f32 %v307, %v307
  %v365 = vmul.f32 %v308, %v308
  %v366 = vmul.f32 %v309, %v309
  %v367 = vmul.f32 %v310, %v310
  %v368 = vmul.f32 %v311, %v311
  %v369 = vmul.f32 %v312, %v312
  %v370 = vmul.f32 %v313, %v313
  %v371 = vmul.f32 %v314, %v314
  %v372 = vmul.f32 %v315, %v315
  %v373 = vmul.f32 %v316, %v316
  %v374 = vmul.f32 %v317, %v317
  %v375 = vmul.f32 %v318, %v318
  %v376 = vmul.f32 %v319, %v319
  %v377 = vmul.f32 %v320, %v320
  %v378 = vmul.f32 %v321, %v321
  %v379 = vmul.f32 %v322, %v322
  %v380 = vmul.f32 %v323, %v323
  %v381 = vmul.f32 %v324, %v324
  %v382 = vmul.f32 %v325, %v325
  %v383 = vmul.f32 %v326, %v326
  %v384 = vmul.f32 %v327, %v327
  %v385 = vmul.f32 %v328, %v328
  %v386 = vsel %vm332, %v334, 0.0
  %v387 = vsel %vm333, %v335, 0.0
  %v388 = vsel %vm332, %v336, 0.0
  %v389 = vsel %vm333, %v337, 0.0
  %v390 = vsel %vm332, %v338, 0.0
  %v391 = vsel %vm333, %v339, 0.0
  %v392 = vsel %vm332, %v340, 0.0
  %v393 = vsel %vm333, %v341, 0.0
  %v394 = vsel %vm332, %v342, 0.0
  %v395 = vsel %vm333, %v343, 0.0
  %v396 = vsel %vm332, %v344, 0.0
  %v397 = vsel %vm333, %v345, 0.0
  %v398 = vsel %vm332, %v346, 0.0
  %v399 = vsel %vm333, %v347, 0.0
  %v400 = vsel %vm332, %v348, 0.0
  %v401 = vsel %vm333, %v349, 0.0
  %v402 = vsel %vm332, %v350, 0.0
  %v403 = vsel %vm333, %v351, 0.0
  %v404 = vsel %vm332, %v352, 0.0
  %v405 = vsel %vm333, %v353, 0.0
  %v406 = vsel %vm332, %v354, 0.0
  %v407 = vsel %vm333, %v355, 0.0
  %v408 = vsel %vm332, %v356, 0.0
  %v409 = vsel %vm333, %v357, 0.0
  %v410 = vsel %vm332, %v358, 0.0
  %v411 = vsel %vm333, %v359, 0.0
  %v412 = vsel %vm332, %v360, 0.0
  %v413 = vsel %vm333, %v361, 0.0
  %v414 = vsel %vm332, %v362, 0.0
  %v415 = vsel %vm333, %v363, 0.0
  %v416 = vsel %vm332, %v364, 0.0
  %v417 = vsel %vm333, %v365, 0.0
  %v418 = vsel %vm332, %v366, 0.0
  %v419 = vsel %vm333, %v367, 0.0
  %v420 = vsel %vm332, %v368, 0.0
  %v421 = vsel %vm333, %v369, 0.0
  %v422 = vsel %vm332, %v370, 0.0
  %v423 = vsel %vm333, %v371, 0.0
  %v424 = vsel %vm332, %v372, 0.0
  %v425 = vsel %vm333, %v373, 0.0
  %v426 = vsel %vm332, %v374, 0.0
  %v427 = vsel %vm333, %v375, 0.0
  %v428 = vsel %vm332, %v376, 0.0
  %v429 = vsel %vm333, %v377, 0.0
  %v430 = vsel %vm332, %v378, 0.0
  %v431 = vsel %vm333, %v379, 0.0
  %v432 = vsel %vm332, %v380, 0.0
  %v433 = vsel %vm333, %v381, 0.0
  %v434 = vsel %vm332, %v382, 0.0
  %v435 = vsel %vm333, %v383, 0.0
  %v436 = vsel %vm332, %v384, 0.0
  %v437 = vsel %vm333, %v385, 0.0
  %v438 = vadd.f32 %v386, %v387
  %439 = vadd.xlane.f32.xlu0 %v438
  %v440 = vpop.xlane.xlu0 %439
  %v441 = vadd.f32 %v388, %v389
  %442 = vadd.xlane.f32.xlu0 %v441
  %v443 = vpop.xlane.xlu0 %442
  %v444 = vadd.f32 %v390, %v391
  %445 = vadd.xlane.f32.xlu0 %v444
  %v446 = vpop.xlane.xlu0 %445
  %v447 = vadd.f32 %v392, %v393
  %448 = vadd.xlane.f32.xlu0 %v447
  %v449 = vpop.xlane.xlu0 %448
  %v450 = vadd.f32 %v394, %v395
  %451 = vadd.xlane.f32.xlu0 %v450
  %v452 = vpop.xlane.xlu0 %451
  %v453 = vadd.f32 %v396, %v397
  %454 = vadd.xlane.f32.xlu0 %v453
  %v455 = vpop.xlane.xlu0 %454
  %v456 = vadd.f32 %v398, %v399
  %457 = vadd.xlane.f32.xlu0 %v456
  %v458 = vpop.xlane.xlu0 %457
  %v459 = vadd.f32 %v400, %v401
  %460 = vadd.xlane.f32.xlu0 %v459
  %v461 = vpop.xlane.xlu0 %460
  %v462 = vadd.f32 %v402, %v403
  %463 = vadd.xlane.f32.xlu0 %v462
  %v464 = vpop.xlane.xlu0 %463
  %v465 = vadd.f32 %v404, %v405
  %466 = vadd.xlane.f32.xlu0 %v465
  %v467 = vpop.xlane.xlu0 %466
  %v468 = vadd.f32 %v406, %v407
  %469 = vadd.xlane.f32.xlu0 %v468
  %v470 = vpop.xlane.xlu0 %469
  %v471 = vadd.f32 %v408, %v409
  %472 = vadd.xlane.f32.xlu0 %v471
  %v473 = vpop.xlane.xlu0 %472
  %v474 = vadd.f32 %v410, %v411
  %475 = vadd.xlane.f32.xlu0 %v474
  %v476 = vpop.xlane.xlu0 %475
  %v477 = vadd.f32 %v412, %v413
  %478 = vadd.xlane.f32.xlu0 %v477
  %v479 = vpop.xlane.xlu0 %478
  %v480 = vadd.f32 %v414, %v415
  %481 = vadd.xlane.f32.xlu0 %v480
  %v482 = vpop.xlane.xlu0 %481
  %v483 = vadd.f32 %v416, %v417
  %484 = vadd.xlane.f32.xlu0 %v483
  %v485 = vpop.xlane.xlu0 %484
  %v486 = vadd.f32 %v418, %v419
  %487 = vadd.xlane.f32.xlu0 %v486
  %v488 = vpop.xlane.xlu0 %487
  %v489 = vadd.f32 %v420, %v421
  %490 = vadd.xlane.f32.xlu0 %v489
  %v491 = vpop.xlane.xlu0 %490
  %v492 = vadd.f32 %v422, %v423
  %493 = vadd.xlane.f32.xlu0 %v492
  %v494 = vpop.xlane.xlu0 %493
  %v495 = vadd.f32 %v424, %v425
  %496 = vadd.xlane.f32.xlu0 %v495
  %v497 = vpop.xlane.xlu0 %496
  %v498 = vadd.f32 %v426, %v427
  %499 = vadd.xlane.f32.xlu0 %v498
  %v500 = vpop.xlane.xlu0 %499
  %v501 = vadd.f32 %v428, %v429
  %502 = vadd.xlane.f32.xlu0 %v501
  %v503 = vpop.xlane.xlu0 %502
  %v504 = vadd.f32 %v430, %v431
  %505 = vadd.xlane.f32.xlu0 %v504
  %v506 = vpop.xlane.xlu0 %505
  %v507 = vadd.f32 %v432, %v433
  %508 = vadd.xlane.f32.xlu0 %v507
  %v509 = vpop.xlane.xlu0 %508
  %v510 = vadd.f32 %v434, %v435
  %511 = vadd.xlane.f32.xlu0 %v510
  %v512 = vpop.xlane.xlu0 %511
  %v513 = vadd.f32 %v436, %v437
  %514 = vadd.xlane.f32.xlu0 %v513
  %v515 = vpop.xlane.xlu0 %514
  %v516 = vadd.f32 %v440, 0.0
  %v517 = vadd.f32 %v443, 0.0
  %v518 = vadd.f32 %v446, 0.0
  %v519 = vadd.f32 %v449, 0.0
  %v520 = vadd.f32 %v452, 0.0
  %v521 = vadd.f32 %v455, 0.0
  %v522 = vadd.f32 %v458, 0.0
  %v523 = vadd.f32 %v461, 0.0
  %v524 = vadd.f32 %v464, 0.0
  %v525 = vadd.f32 %v467, 0.0
  %v526 = vadd.f32 %v470, 0.0
  %v527 = vadd.f32 %v473, 0.0
  %v528 = vadd.f32 %v476, 0.0
  %v529 = vadd.f32 %v479, 0.0
  %v530 = vadd.f32 %v482, 0.0
  %v531 = vadd.f32 %v485, 0.0
  %v532 = vadd.f32 %v488, 0.0
  %v533 = vadd.f32 %v491, 0.0
  %v534 = vadd.f32 %v494, 0.0
  %v535 = vadd.f32 %v497, 0.0
  %v536 = vadd.f32 %v500, 0.0
  %v537 = vadd.f32 %v503, 0.0
  %v538 = vadd.f32 %v506, 0.0
  %v539 = vadd.f32 %v509, 0.0
  %v540 = vadd.f32 %v512, 0.0
  %v541 = vadd.f32 %v515, 0.0
  %v542 = vmul.f32 %v516, 0.0051020407
  %v543 = vmul.f32 %v517, 0.0051020407
  %v544 = vmul.f32 %v518, 0.0051020407
  %v545 = vmul.f32 %v519, 0.0051020407
  %v546 = vmul.f32 %v520, 0.0051020407
  %v547 = vmul.f32 %v521, 0.0051020407
  %v548 = vmul.f32 %v522, 0.0051020407
  %v549 = vmul.f32 %v523, 0.0051020407
  %v550 = vmul.f32 %v524, 0.0051020407
  %v551 = vmul.f32 %v525, 0.0051020407
  %v552 = vmul.f32 %v526, 0.0051020407
  %v553 = vmul.f32 %v527, 0.0051020407
  %v554 = vmul.f32 %v528, 0.0051020407
  %v555 = vmul.f32 %v529, 0.0051020407
  %v556 = vmul.f32 %v530, 0.0051020407
  %v557 = vmul.f32 %v531, 0.0051020407
  %v558 = vmul.f32 %v532, 0.0051020407
  %v559 = vmul.f32 %v533, 0.0051020407
  %v560 = vmul.f32 %v534, 0.0051020407
  %v561 = vmul.f32 %v535, 0.0051020407
  %v562 = vmul.f32 %v536, 0.0051020407
  %v563 = vmul.f32 %v537, 0.0051020407
  %v564 = vmul.f32 %v538, 0.0051020407
  %v565 = vmul.f32 %v539, 0.0051020407
  %v566 = vmul.f32 %v540, 0.0051020407
  %v567 = vmul.f32 %v541, 0.0051020407
  %v568 = vadd.f32 %v542, 1e-05
  %v569 = vadd.f32 %v543, 1e-05
  %v570 = vadd.f32 %v544, 1e-05
  %v571 = vadd.f32 %v545, 1e-05
  %v572 = vadd.f32 %v546, 1e-05
  %v573 = vadd.f32 %v547, 1e-05
  %v574 = vadd.f32 %v548, 1e-05
  %v575 = vadd.f32 %v549, 1e-05
  %v576 = vadd.f32 %v550, 1e-05
  %v577 = vadd.f32 %v551, 1e-05
  %v578 = vadd.f32 %v552, 1e-05
  %v579 = vadd.f32 %v553, 1e-05
  %v580 = vadd.f32 %v554, 1e-05
  %v581 = vadd.f32 %v555, 1e-05
  %v582 = vadd.f32 %v556, 1e-05
  %v583 = vadd.f32 %v557, 1e-05
  %v584 = vadd.f32 %v558, 1e-05
  %v585 = vadd.f32 %v559, 1e-05
  %v586 = vadd.f32 %v560, 1e-05
  %v587 = vadd.f32 %v561, 1e-05
  %v588 = vadd.f32 %v562, 1e-05
  %v589 = vadd.f32 %v563, 1e-05
  %v590 = vadd.f32 %v564, 1e-05
  %v591 = vadd.f32 %v565, 1e-05
  %v592 = vadd.f32 %v566, 1e-05
  %v593 = vadd.f32 %v567, 1e-05
  %v594 = vrsqrt.pop %v568
  %v595 = vrsqrt.pop %v569
  %v596 = vrsqrt.pop %v570
  %v597 = vrsqrt.pop %v571
  %v598 = vrsqrt.pop %v572
  %v599 = vrsqrt.pop %v573
  %v600 = vrsqrt.pop %v574
  %v601 = vrsqrt.pop %v575
  %v602 = vrsqrt.pop %v576
  %v603 = vrsqrt.pop %v577
  %v604 = vrsqrt.pop %v578
  %v605 = vrsqrt.pop %v579
  %v606 = vrsqrt.pop %v580
  %v607 = vrsqrt.pop %v581
  %v608 = vrsqrt.pop %v582
  %v609 = vrsqrt.pop %v583
  %v610 = vrsqrt.pop %v584
  %v611 = vrsqrt.pop %v585
  %v612 = vrsqrt.pop %v586
  %v613 = vrsqrt.pop %v587
  %v614 = vrsqrt.pop %v588
  %v615 = vrsqrt.pop %v589
  %v616 = vrsqrt.pop %v590
  %v617 = vrsqrt.pop %v591
  %v618 = vrsqrt.pop %v592
  %v619 = vrsqrt.pop %v593
  %v620 = vmul.f32 %v594, %v121
  %v621 = vmul.f32 %v595, %v122
  %v622 = vmul.f32 %v596, %v123
  %v623 = vmul.f32 %v597, %v124
  %v624 = vmul.f32 %v598, %v125
  %v625 = vmul.f32 %v599, %v126
  %v626 = vmul.f32 %v600, %v127
  %v627 = vmul.f32 %v601, %v128
  %v628 = vmul.f32 %v602, %v129
  %v629 = vmul.f32 %v603, %v130
  %v630 = vmul.f32 %v604, %v131
  %v631 = vmul.f32 %v605, %v132
  %v632 = vmul.f32 %v606, %v133
  %v633 = vmul.f32 %v607, %v134
  %v634 = vmul.f32 %v608, %v135
  %v635 = vmul.f32 %v609, %v136
  %v636 = vmul.f32 %v610, %v137
  %v637 = vmul.f32 %v611, %v138
  %v638 = vmul.f32 %v612, %v139
  %v639 = vmul.f32 %v613, %v140
  %v640 = vmul.f32 %v614, %v141
  %v641 = vmul.f32 %v615, %v142
  %v642 = vmul.f32 %v616, %v143
  %v643 = vmul.f32 %v617, %v144
  %v644 = vmul.f32 %v618, %v145
  %v645 = vmul.f32 %v619, %v146
  %647 = vset.pattern.permute.xlu0 0
  %648 = vperm.xlu0 %647, %v620
  %v649 = vpop.permute.xlu0 %648
  %652 = vset.pattern.permute.xlu0 0
  %653 = vperm.xlu0 %652, %v621
  %v654 = vpop.permute.xlu0 %653
  %657 = vset.pattern.permute.xlu0 0
  %658 = vperm.xlu0 %657, %v622
  %v659 = vpop.permute.xlu0 %658
  %662 = vset.pattern.permute.xlu0 0
  %663 = vperm.xlu0 %662, %v623
  %v664 = vpop.permute.xlu0 %663
  %667 = vset.pattern.permute.xlu0 0
  %668 = vperm.xlu0 %667, %v624
  %v669 = vpop.permute.xlu0 %668
  %672 = vset.pattern.permute.xlu0 0
  %673 = vperm.xlu0 %672, %v625
  %v674 = vpop.permute.xlu0 %673
  %677 = vset.pattern.permute.xlu0 0
  %678 = vperm.xlu0 %677, %v626
  %v679 = vpop.permute.xlu0 %678
  %682 = vset.pattern.permute.xlu0 0
  %683 = vperm.xlu0 %682, %v627
  %v684 = vpop.permute.xlu0 %683
  %687 = vset.pattern.permute.xlu0 0
  %688 = vperm.xlu0 %687, %v628
  %v689 = vpop.permute.xlu0 %688
  %692 = vset.pattern.permute.xlu0 0
  %693 = vperm.xlu0 %692, %v629
  %v694 = vpop.permute.xlu0 %693
  %697 = vset.pattern.permute.xlu0 0
  %698 = vperm.xlu0 %697, %v630
  %v699 = vpop.permute.xlu0 %698
  %702 = vset.pattern.permute.xlu0 0
  %703 = vperm.xlu0 %702, %v631
  %v704 = vpop.permute.xlu0 %703
  %707 = vset.pattern.permute.xlu0 0
  %708 = vperm.xlu0 %707, %v632
  %v709 = vpop.permute.xlu0 %708
  %712 = vset.pattern.permute.xlu0 0
  %713 = vperm.xlu0 %712, %v633
  %v714 = vpop.permute.xlu0 %713
  %717 = vset.pattern.permute.xlu0 0
  %718 = vperm.xlu0 %717, %v634
  %v719 = vpop.permute.xlu0 %718
  %722 = vset.pattern.permute.xlu0 0
  %723 = vperm.xlu0 %722, %v635
  %v724 = vpop.permute.xlu0 %723
  %727 = vset.pattern.permute.xlu0 0
  %728 = vperm.xlu0 %727, %v636
  %v729 = vpop.permute.xlu0 %728
  %732 = vset.pattern.permute.xlu0 0
  %733 = vperm.xlu0 %732, %v637
  %v734 = vpop.permute.xlu0 %733
  %737 = vset.pattern.permute.xlu0 0
  %738 = vperm.xlu0 %737, %v638
  %v739 = vpop.permute.xlu0 %738
  %742 = vset.pattern.permute.xlu0 0
  %743 = vperm.xlu0 %742, %v639
  %v744 = vpop.permute.xlu0 %743
  %747 = vset.pattern.permute.xlu0 0
  %748 = vperm.xlu0 %747, %v640
  %v749 = vpop.permute.xlu0 %748
  %752 = vset.pattern.permute.xlu0 0
  %753 = vperm.xlu0 %752, %v641
  %v754 = vpop.permute.xlu0 %753
  %757 = vset.pattern.permute.xlu0 0
  %758 = vperm.xlu0 %757, %v642
  %v759 = vpop.permute.xlu0 %758
  %762 = vset.pattern.permute.xlu0 0
  %763 = vperm.xlu0 %762, %v643
  %v764 = vpop.permute.xlu0 %763
  %767 = vset.pattern.permute.xlu0 0
  %768 = vperm.xlu0 %767, %v644
  %v769 = vpop.permute.xlu0 %768
  %772 = vset.pattern.permute.xlu0 0
  %773 = vperm.xlu0 %772, %v645
  %v774 = vpop.permute.xlu0 %773
  %v776 = vmul.f32 %v277, %v649
  %v777 = vmul.f32 %v278, %v649
  %v778 = vmul.f32 %v279, %v654
  %v779 = vmul.f32 %v280, %v654
  %v780 = vmul.f32 %v281, %v659
  %v781 = vmul.f32 %v282, %v659
  %v782 = vmul.f32 %v283, %v664
  %v783 = vmul.f32 %v284, %v664
  %v784 = vmul.f32 %v285, %v669
  %v785 = vmul.f32 %v286, %v669
  %v786 = vmul.f32 %v287, %v674
  %v787 = vmul.f32 %v288, %v674
  %v788 = vmul.f32 %v289, %v679
  %v789 = vmul.f32 %v290, %v679
  %v790 = vmul.f32 %v291, %v684
  %v791 = vmul.f32 %v292, %v684
  %v792 = vmul.f32 %v293, %v689
  %v793 = vmul.f32 %v294, %v689
  %v794 = vmul.f32 %v295, %v694
  %v795 = vmul.f32 %v296, %v694
  %v796 = vmul.f32 %v297, %v699
  %v797 = vmul.f32 %v298, %v699
  %v798 = vmul.f32 %v299, %v704
  %v799 = vmul.f32 %v300, %v704
  %v800 = vmul.f32 %v301, %v709
  %v801 = vmul.f32 %v302, %v709
  %v802 = vmul.f32 %v303, %v714
  %v803 = vmul.f32 %v304, %v714
  %v804 = vmul.f32 %v305, %v719
  %v805 = vmul.f32 %v306, %v719
  %v806 = vmul.f32 %v307, %v724
  %v807 = vmul.f32 %v308, %v724
  %v808 = vmul.f32 %v309, %v729
  %v809 = vmul.f32 %v310, %v729
  %v810 = vmul.f32 %v311, %v734
  %v811 = vmul.f32 %v312, %v734
  %v812 = vmul.f32 %v313, %v739
  %v813 = vmul.f32 %v314, %v739
  %v814 = vmul.f32 %v315, %v744
  %v815 = vmul.f32 %v316, %v744
  %v816 = vmul.f32 %v317, %v749
  %v817 = vmul.f32 %v318, %v749
  %v818 = vmul.f32 %v319, %v754
  %v819 = vmul.f32 %v320, %v754
  %v820 = vmul.f32 %v321, %v759
  %v821 = vmul.f32 %v322, %v759
  %v822 = vmul.f32 %v323, %v764
  %v823 = vmul.f32 %v324, %v764
  %v824 = vmul.f32 %v325, %v769
  %v825 = vmul.f32 %v326, %v769
  %v826 = vmul.f32 %v327, %v774
  %v827 = vmul.f32 %v328, %v774
  %v828 = vadd.f32 %v69, %v776
  %v829 = vadd.f32 %v70, %v777
  %v830 = vadd.f32 %v71, %v778
  %v831 = vadd.f32 %v72, %v779
  %v832 = vadd.f32 %v73, %v780
  %v833 = vadd.f32 %v74, %v781
  %v834 = vadd.f32 %v75, %v782
  %v835 = vadd.f32 %v76, %v783
  %v836 = vadd.f32 %v77, %v784
  %v837 = vadd.f32 %v78, %v785
  %v838 = vadd.f32 %v79, %v786
  %v839 = vadd.f32 %v80, %v787
  %v840 = vadd.f32 %v81, %v788
  %v841 = vadd.f32 %v82, %v789
  %v842 = vadd.f32 %v83, %v790
  %v843 = vadd.f32 %v84, %v791
  %v844 = vadd.f32 %v85, %v792
  %v845 = vadd.f32 %v86, %v793
  %v846 = vadd.f32 %v87, %v794
  %v847 = vadd.f32 %v88, %v795
  %v848 = vadd.f32 %v89, %v796
  %v849 = vadd.f32 %v90, %v797
  %v850 = vadd.f32 %v91, %v798
  %v851 = vadd.f32 %v92, %v799
  %v852 = vadd.f32 %v93, %v800
  %v853 = vadd.f32 %v94, %v801
  %v854 = vadd.f32 %v95, %v802
  %v855 = vadd.f32 %v96, %v803
  %v856 = vadd.f32 %v97, %v804
  %v857 = vadd.f32 %v98, %v805
  %v858 = vadd.f32 %v99, %v806
  %v859 = vadd.f32 %v100, %v807
  %v860 = vadd.f32 %v101, %v808
  %v861 = vadd.f32 %v102, %v809
  %v862 = vadd.f32 %v103, %v810
  %v863 = vadd.f32 %v104, %v811
  %v864 = vadd.f32 %v105, %v812
  %v865 = vadd.f32 %v106, %v813
  %v866 = vadd.f32 %v107, %v814
  %v867 = vadd.f32 %v108, %v815
  %v868 = vadd.f32 %v109, %v816
  %v869 = vadd.f32 %v110, %v817
  %v870 = vadd.f32 %v111, %v818
  %v871 = vadd.f32 %v112, %v819
  %v872 = vadd.f32 %v113, %v820
  %v873 = vadd.f32 %v114, %v821
  %v874 = vadd.f32 %v115, %v822
  %v875 = vadd.f32 %v116, %v823
  %v876 = vadd.f32 %v117, %v824
  %v877 = vadd.f32 %v118, %v825
  %v878 = vadd.f32 %v119, %v826
  %v879 = vadd.f32 %v120, %v827
  %881 = vset.pattern.permute.xlu0 1
  %882 = vperm.xlu0 %881, %v121
  %v883 = vpop.permute.xlu0 %882
  %886 = vset.pattern.permute.xlu0 1
  %887 = vperm.xlu0 %886, %v122
  %v888 = vpop.permute.xlu0 %887
  %891 = vset.pattern.permute.xlu0 1
  %892 = vperm.xlu0 %891, %v123
  %v893 = vpop.permute.xlu0 %892
  %896 = vset.pattern.permute.xlu0 1
  %897 = vperm.xlu0 %896, %v124
  %v898 = vpop.permute.xlu0 %897
  %901 = vset.pattern.permute.xlu0 1
  %902 = vperm.xlu0 %901, %v125
  %v903 = vpop.permute.xlu0 %902
  %906 = vset.pattern.permute.xlu0 1
  %907 = vperm.xlu0 %906, %v126
  %v908 = vpop.permute.xlu0 %907
  %911 = vset.pattern.permute.xlu0 1
  %912 = vperm.xlu0 %911, %v127
  %v913 = vpop.permute.xlu0 %912
  %916 = vset.pattern.permute.xlu0 1
  %917 = vperm.xlu0 %916, %v128
  %v918 = vpop.permute.xlu0 %917
  %921 = vset.pattern.permute.xlu0 1
  %922 = vperm.xlu0 %921, %v129
  %v923 = vpop.permute.xlu0 %922
  %926 = vset.pattern.permute.xlu0 1
  %927 = vperm.xlu0 %926, %v130
  %v928 = vpop.permute.xlu0 %927
  %931 = vset.pattern.permute.xlu0 1
  %932 = vperm.xlu0 %931, %v131
  %v933 = vpop.permute.xlu0 %932
  %936 = vset.pattern.permute.xlu0 1
  %937 = vperm.xlu0 %936, %v132
  %v938 = vpop.permute.xlu0 %937
  %941 = vset.pattern.permute.xlu0 1
  %942 = vperm.xlu0 %941, %v133
  %v943 = vpop.permute.xlu0 %942
  %946 = vset.pattern.permute.xlu0 1
  %947 = vperm.xlu0 %946, %v134
  %v948 = vpop.permute.xlu0 %947
  %951 = vset.pattern.permute.xlu0 1
  %952 = vperm.xlu0 %951, %v135
  %v953 = vpop.permute.xlu0 %952
  %956 = vset.pattern.permute.xlu0 1
  %957 = vperm.xlu0 %956, %v136
  %v958 = vpop.permute.xlu0 %957
  %961 = vset.pattern.permute.xlu0 1
  %962 = vperm.xlu0 %961, %v137
  %v963 = vpop.permute.xlu0 %962
  %966 = vset.pattern.permute.xlu0 1
  %967 = vperm.xlu0 %966, %v138
  %v968 = vpop.permute.xlu0 %967
  %971 = vset.pattern.permute.xlu0 1
  %972 = vperm.xlu0 %971, %v139
  %v973 = vpop.permute.xlu0 %972
  %976 = vset.pattern.permute.xlu0 1
  %977 = vperm.xlu0 %976, %v140
  %v978 = vpop.permute.xlu0 %977
  %981 = vset.pattern.permute.xlu0 1
  %982 = vperm.xlu0 %981, %v141
  %v983 = vpop.permute.xlu0 %982
  %986 = vset.pattern.permute.xlu0 1
  %987 = vperm.xlu0 %986, %v142
  %v988 = vpop.permute.xlu0 %987
  %991 = vset.pattern.permute.xlu0 1
  %992 = vperm.xlu0 %991, %v143
  %v993 = vpop.permute.xlu0 %992
  %996 = vset.pattern.permute.xlu0 1
  %997 = vperm.xlu0 %996, %v144
  %v998 = vpop.permute.xlu0 %997
  %1001 = vset.pattern.permute.xlu0 1
  %1002 = vperm.xlu0 %1001, %v145
  %v1003 = vpop.permute.xlu0 %1002
  %1006 = vset.pattern.permute.xlu0 1
  %1007 = vperm.xlu0 %1006, %v146
  %v1008 = vpop.permute.xlu0 %1007
  %v1010 = vadd.f32 %v828, %v883
  %v1011 = vadd.f32 %v829, %v883
  %v1012 = vadd.f32 %v830, %v888
  %v1013 = vadd.f32 %v831, %v888
  %v1014 = vadd.f32 %v832, %v893
  %v1015 = vadd.f32 %v833, %v893
  %v1016 = vadd.f32 %v834, %v898
  %v1017 = vadd.f32 %v835, %v898
  %v1018 = vadd.f32 %v836, %v903
  %v1019 = vadd.f32 %v837, %v903
  %v1020 = vadd.f32 %v838, %v908
  %v1021 = vadd.f32 %v839, %v908
  %v1022 = vadd.f32 %v840, %v913
  %v1023 = vadd.f32 %v841, %v913
  %v1024 = vadd.f32 %v842, %v918
  %v1025 = vadd.f32 %v843, %v918
  %v1026 = vadd.f32 %v844, %v923
  %v1027 = vadd.f32 %v845, %v923
  %v1028 = vadd.f32 %v846, %v928
  %v1029 = vadd.f32 %v847, %v928
  %v1030 = vadd.f32 %v848, %v933
  %v1031 = vadd.f32 %v849, %v933
  %v1032 = vadd.f32 %v850, %v938
  %v1033 = vadd.f32 %v851, %v938
  %v1034 = vadd.f32 %v852, %v943
  %v1035 = vadd.f32 %v853, %v943
  %v1036 = vadd.f32 %v854, %v948
  %v1037 = vadd.f32 %v855, %v948
  %v1038 = vadd.f32 %v856, %v953
  %v1039 = vadd.f32 %v857, %v953
  %v1040 = vadd.f32 %v858, %v958
  %v1041 = vadd.f32 %v859, %v958
  %v1042 = vadd.f32 %v860, %v963
  %v1043 = vadd.f32 %v861, %v963
  %v1044 = vadd.f32 %v862, %v968
  %v1045 = vadd.f32 %v863, %v968
  %v1046 = vadd.f32 %v864, %v973
  %v1047 = vadd.f32 %v865, %v973
  %v1048 = vadd.f32 %v866, %v978
  %v1049 = vadd.f32 %v867, %v978
  %v1050 = vadd.f32 %v868, %v983
  %v1051 = vadd.f32 %v869, %v983
  %v1052 = vadd.f32 %v870, %v988
  %v1053 = vadd.f32 %v871, %v988
  %v1054 = vadd.f32 %v872, %v993
  %v1055 = vadd.f32 %v873, %v993
  %v1056 = vadd.f32 %v874, %v998
  %v1057 = vadd.f32 %v875, %v998
  %v1058 = vadd.f32 %v876, %v1003
  %v1059 = vadd.f32 %v877, %v1003
  %v1060 = vadd.f32 %v878, %v1008
  %v1061 = vadd.f32 %v879, %v1008
  %v1062 = vmax.f32 %v1010, 0.0
  %v1063 = vmax.f32 %v1011, 0.0
  %v1064 = vmax.f32 %v1012, 0.0
  %v1065 = vmax.f32 %v1013, 0.0
  %v1066 = vmax.f32 %v1014, 0.0
  %v1067 = vmax.f32 %v1015, 0.0
  %v1068 = vmax.f32 %v1016, 0.0
  %v1069 = vmax.f32 %v1017, 0.0
  %v1070 = vmax.f32 %v1018, 0.0
  %v1071 = vmax.f32 %v1019, 0.0
  %v1072 = vmax.f32 %v1020, 0.0
  %v1073 = vmax.f32 %v1021, 0.0
  %v1074 = vmax.f32 %v1022, 0.0
  %v1075 = vmax.f32 %v1023, 0.0
  %v1076 = vmax.f32 %v1024, 0.0
  %v1077 = vmax.f32 %v1025, 0.0
  %v1078 = vmax.f32 %v1026, 0.0
  %v1079 = vmax.f32 %v1027, 0.0
  %v1080 = vmax.f32 %v1028, 0.0
  %v1081 = vmax.f32 %v1029, 0.0
  %v1082 = vmax.f32 %v1030, 0.0
  %v1083 = vmax.f32 %v1031, 0.0
  %v1084 = vmax.f32 %v1032, 0.0
  %v1085 = vmax.f32 %v1033, 0.0
  %v1086 = vmax.f32 %v1034, 0.0
  %v1087 = vmax.f32 %v1035, 0.0
  %v1088 = vmax.f32 %v1036, 0.0
  %v1089 = vmax.f32 %v1037, 0.0
  %v1090 = vmax.f32 %v1038, 0.0
  %v1091 = vmax.f32 %v1039, 0.0
  %v1092 = vmax.f32 %v1040, 0.0
  %v1093 = vmax.f32 %v1041, 0.0
  %v1094 = vmax.f32 %v1042, 0.0
  %v1095 = vmax.f32 %v1043, 0.0
  %v1096 = vmax.f32 %v1044, 0.0
  %v1097 = vmax.f32 %v1045, 0.0
  %v1098 = vmax.f32 %v1046, 0.0
  %v1099 = vmax.f32 %v1047, 0.0
  %v1100 = vmax.f32 %v1048, 0.0
  %v1101 = vmax.f32 %v1049, 0.0
  %v1102 = vmax.f32 %v1050, 0.0
  %v1103 = vmax.f32 %v1051, 0.0
  %v1104 = vmax.f32 %v1052, 0.0
  %v1105 = vmax.f32 %v1053, 0.0
  %v1106 = vmax.f32 %v1054, 0.0
  %v1107 = vmax.f32 %v1055, 0.0
  %v1108 = vmax.f32 %v1056, 0.0
  %v1109 = vmax.f32 %v1057, 0.0
  %v1110 = vmax.f32 %v1058, 0.0
  %v1111 = vmax.f32 %v1059, 0.0
  %v1112 = vmax.f32 %v1060, 0.0
  %v1113 = vmax.f32 %v1061, 0.0
  %v1114 = vld [vmem:[%s3] sm:$0xff]
  %v1115 = vld [vmem:[%s3 + $0x8] sm:$0xff]
  %v1116 = vld [vmem:[%s3 + $0x10] sm:$0xff]
  %v1117 = vld [vmem:[%s3 + $0x18] sm:$0xff]
  %v1118 = vld [vmem:[%s3 + $0x20] sm:$0xff]
  %v1119 = vld [vmem:[%s3 + $0x28] sm:$0xff]
  %v1120 = vld [vmem:[%s3 + $0x30] sm:$0xff]
  %v1121 = vld [vmem:[%s3 + $0x38] sm:$0xff]
  %v1122 = vld [vmem:[%s3 + $0x40] sm:$0xff]
  %v1123 = vld [vmem:[%s3 + $0x48] sm:$0xff]
  %v1124 = vld [vmem:[%s3 + $0x50] sm:$0xff]
  %v1125 = vld [vmem:[%s3 + $0x58] sm:$0xff]
  %v1126 = vld [vmem:[%s3 + $0x60] sm:$0xff]
  %v1127 = vld [vmem:[%s3 + $0x68] sm:$0xff]
  %v1128 = vld [vmem:[%s3 + $0x70] sm:$0xff]
  %v1129 = vld [vmem:[%s3 + $0x78] sm:$0xff]
  %v1130 = vld [vmem:[%s3 + $0x80] sm:$0xff]
  %v1131 = vld [vmem:[%s3 + $0x88] sm:$0xff]
  %v1132 = vld [vmem:[%s3 + $0x90] sm:$0xff]
  %v1133 = vld [vmem:[%s3 + $0x98] sm:$0xff]
  %v1134 = vld [vmem:[%s3 + $0xa0] sm:$0xff]
  %v1135 = vld [vmem:[%s3 + $0xa8] sm:$0xff]
  %v1136 = vld [vmem:[%s3 + $0xb0] sm:$0xff]
  %v1137 = vld [vmem:[%s3 + $0xb8] sm:$0xff]
  %v1138 = vld [vmem:[%s3 + $0xc0] sm:$0xff]
  %v1139 = vld [vmem:[%s3 + $0xc8] sm:$0xff]
  %v1140 = vld [vmem:[%s3 + $0xd0] sm:$0xff]
  %v1141 = vld [vmem:[%s3 + $0xd8] sm:$0xff]
  %v1142 = vld [vmem:[%s3 + $0xe0] sm:$0xff]
  %v1143 = vld [vmem:[%s3 + $0xe8] sm:$0xff]
  %v1144 = vld [vmem:[%s3 + $0xf0] sm:$0xff]
  %v1145 = vld [vmem:[%s3 + $0xf8] sm:$0xff]
  %v1146 = vld [vmem:[%s3 + $0x100] sm:$0xff]
  %v1147 = vld [vmem:[%s3 + $0x108] sm:$0xff]
  %v1148 = vld [vmem:[%s3 + $0x110] sm:$0xff]
  %v1149 = vld [vmem:[%s3 + $0x118] sm:$0xff]
  %v1150 = vld [vmem:[%s3 + $0x120] sm:$0xff]
  %v1151 = vld [vmem:[%s3 + $0x128] sm:$0xff]
  %v1152 = vld [vmem:[%s3 + $0x130] sm:$0xff]
  %v1153 = vld [vmem:[%s3 + $0x138] sm:$0xff]
  %v1154 = vld [vmem:[%s3 + $0x140] sm:$0xff]
  %v1155 = vld [vmem:[%s3 + $0x148] sm:$0xff]
  %v1156 = vld [vmem:[%s3 + $0x150] sm:$0xff]
  %v1157 = vld [vmem:[%s3 + $0x158] sm:$0xff]
  %v1158 = vld [vmem:[%s3 + $0x160] sm:$0xff]
  %v1159 = vld [vmem:[%s3 + $0x168] sm:$0xff]
  %v1160 = vld [vmem:[%s3 + $0x170] sm:$0xff]
  %v1161 = vld [vmem:[%s3 + $0x178] sm:$0xff]
  %v1162 = vld [vmem:[%s3 + $0x180] sm:$0xff]
  %v1163 = vld [vmem:[%s3 + $0x188] sm:$0xff]
  %v1164 = vld [vmem:[%s3 + $0x190] sm:$0xff]
  %v1165 = vld [vmem:[%s3 + $0x198] sm:$0xff]
  %vm1166 = vcmask 654336
  %v1168 = vsel %vm1166, %v1115, 0
  %v1171 = vsel %vm1166, %v1117, 0
  %v1174 = vsel %vm1166, %v1119, 0
  %v1177 = vsel %vm1166, %v1121, 0
  %v1180 = vsel %vm1166, %v1123, 0
  %v1183 = vsel %vm1166, %v1125, 0
  %v1186 = vsel %vm1166, %v1127, 0
  %v1189 = vsel %vm1166, %v1129, 0
  %v1192 = vsel %vm1166, %v1131, 0
  %v1195 = vsel %vm1166, %v1133, 0
  %v1198 = vsel %vm1166, %v1135, 0
  %v1201 = vsel %vm1166, %v1137, 0
  %v1204 = vsel %vm1166, %v1139, 0
  %v1207 = vsel %vm1166, %v1141, 0
  %v1210 = vsel %vm1166, %v1143, 0
  %v1213 = vsel %vm1166, %v1145, 0
  %v1216 = vsel %vm1166, %v1147, 0
  %v1219 = vsel %vm1166, %v1149, 0
  %v1222 = vsel %vm1166, %v1151, 0
  %v1225 = vsel %vm1166, %v1153, 0
  %v1228 = vsel %vm1166, %v1155, 0
  %v1231 = vsel %vm1166, %v1157, 0
  %v1234 = vsel %vm1166, %v1159, 0
  %v1237 = vsel %vm1166, %v1161, 0
  %v1240 = vsel %vm1166, %v1163, 0
  %v1243 = vsel %vm1166, %v1165, 0
  %1245 = vmatprep.subr.mxu0 %v1063
  %1246 = vmatpush1.msra.mxu0 %v1062
  %1247 = vmatprep.subr.mxu0 %v1065
  %1248 = vmatpush1.msra.mxu0 %v1064
  %1249 = vmatprep.subr.mxu0 %v1067
  %1250 = vmatpush1.msra.mxu0 %v1066
  %1251 = vmatprep.subr.mxu0 %v1069
  %1252 = vmatpush1.msra.mxu0 %v1068
  %1253 = vmatprep.subr.mxu0 %v1071
  %1254 = vmatpush1.msra.mxu0 %v1070
  %1255 = vmatprep.subr.mxu0 %v1073
  %1256 = vmatpush1.msra.mxu0 %v1072
  %1257 = vmatprep.subr.mxu0 %v1075
  %1258 = vmatpush1.msra.mxu0 %v1074
  %1259 = vmatprep.subr.mxu0 %v1077
  %1260 = vmatpush1.msra.mxu0 %v1076
  %1261 = vmatprep.subr.mxu0 %v1079
  %1262 = vmatpush1.msra.mxu0 %v1078
  %1263 = vmatprep.subr.mxu0 %v1081
  %1264 = vmatpush1.msra.mxu0 %v1080
  %1265 = vmatprep.subr.mxu0 %v1083
  %1266 = vmatpush1.msra.mxu0 %v1082
  %1267 = vmatprep.subr.mxu0 %v1085
  %1268 = vmatpush1.msra.mxu0 %v1084
  %1269 = vmatprep.subr.mxu0 %v1087
  %1270 = vmatpush1.msra.mxu0 %v1086
  %1271 = vmatprep.subr.mxu0 %v1089
  %1272 = vmatpush1.msra.mxu0 %v1088
  %1273 = vmatprep.subr.mxu0 %v1091
  %1274 = vmatpush1.msra.mxu0 %v1090
  %1275 = vmatprep.subr.mxu0 %v1093
  %1276 = vmatpush1.msra.mxu0 %v1092
  %1277 = vmatprep.subr.mxu0 %v1095
  %1278 = vmatpush1.msra.mxu0 %v1094
  %1279 = vmatprep.subr.mxu0 %v1097
  %1280 = vmatpush1.msra.mxu0 %v1096
  %1281 = vmatprep.subr.mxu0 %v1099
  %1282 = vmatpush1.msra.mxu0 %v1098
  %1283 = vmatprep.subr.mxu0 %v1101
  %1284 = vmatpush1.msra.mxu0 %v1100
  %1285 = vmatprep.subr.mxu0 %v1103
  %1286 = vmatpush1.msra.mxu0 %v1102
  %1287 = vmatprep.subr.mxu0 %v1105
  %1288 = vmatpush1.msra.mxu0 %v1104
  %1289 = vmatprep.subr.mxu0 %v1107
  %1290 = vmatpush1.msra.mxu0 %v1106
  %1291 = vmatprep.subr.mxu0 %v1109
  %1292 = vmatpush1.msra.mxu0 %v1108
  %1293 = vmatprep.subr.mxu0 %v1111
  %1294 = vmatpush1.msra.mxu0 %v1110
  %1295 = vmatprep.subr.mxu0 %v1113
  %1296 = vmatpush1.msra.mxu0 %v1112
  %1297 = vmatprep.subr.mxu0 0.0
  %1298 = vmatpush1.msra.mxu0 0.0
  %1299 = vmatprep.subr.mxu0 0.0
  %1300 = vmatpush1.msra.mxu0 0.0
  %1301 = vmatprep.subr.mxu0 0.0
  %1302 = vmatpush1.msra.mxu0 0.0
  %1303 = vmatprep.subr.mxu0 0.0
  %1304 = vmatpush1.msra.mxu0 0.0
  %1305 = vmatprep.subr.mxu0 0.0
  %1306 = vmatpush1.msra.mxu0 0.0
  %1307 = vmatprep.subr.mxu0 0.0
  %1308 = vmatpush1.msra.mxu0 0.0
  %1309 = vmatprep.mubr.f32.mxu0 %v1168
  %1310 = vmatmul.mubr.f32.gmra.mrb[0].mxu0 %v1114
  %v1311 = vpop.f32.mrb[0].mxu0
  %v1312 = vadd.f32 0.0, %v1311
  %v1313 = vpop.f32.mrb[0].mxu0
  %v1314 = vadd.f32 0.0, %v1313
  %1315 = vmatprep.mubr.f32.mxu0 %v1171
  %1316 = vmatmul.mubr.f32.gmra.mrb[0].mxu0 %v1116
  %v1317 = vpop.f32.mrb[0].mxu0
  %v1318 = vadd.f32 0.0, %v1317
  %v1319 = vpop.f32.mrb[0].mxu0
  %v1320 = vadd.f32 0.0, %v1319
  %1321 = vmatprep.mubr.f32.mxu0 %v1174
  %1322 = vmatmul.mubr.f32.gmra.mrb[0].mxu0 %v1118
  %v1323 = vpop.f32.mrb[0].mxu0
  %v1324 = vadd.f32 0.0, %v1323
  %v1325 = vpop.f32.mrb[0].mxu0
  %v1326 = vadd.f32 0.0, %v1325
  %1327 = vmatprep.mubr.f32.mxu0 %v1177
  %1328 = vmatmul.mubr.f32.gmra.mrb[0].mxu0 %v1120
  %v1329 = vpop.f32.mrb[0].mxu0
  %v1330 = vadd.f32 0.0, %v1329
  %v1331 = vpop.f32.mrb[0].mxu0
  %v1332 = vadd.f32 0.0, %v1331
  %1333 = vmatprep.mubr.f32.mxu0 %v1180
  %1334 = vmatmul.mubr.f32.gmra.mrb[0].mxu0 %v1122
  %v1335 = vpop.f32.mrb[0].mxu0
  %v1336 = vadd.f32 0.0, %v1335
  %v1337 = vpop.f32.mrb[0].mxu0
  %v1338 = vadd.f32 0.0, %v1337
  %1339 = vmatprep.mubr.f32.mxu0 %v1183
  %1340 = vmatmul.mubr.f32.gmra.mrb[0].mxu0 %v1124
  %v1341 = vpop.f32.mrb[0].mxu0
  %v1342 = vadd.f32 0.0, %v1341
  %v1343 = vpop.f32.mrb[0].mxu0
  %v1344 = vadd.f32 0.0, %v1343
  %1345 = vmatprep.mubr.f32.mxu0 %v1186
  %1346 = vmatmul.mubr.f32.gmra.mrb[0].mxu0 %v1126
  %v1347 = vpop.f32.mrb[0].mxu0
  %v1348 = vadd.f32 0.0, %v1347
  %v1349 = vpop.f32.mrb[0].mxu0
  %v1350 = vadd.f32 0.0, %v1349
  %1351 = vmatprep.mubr.f32.mxu0 %v1189
  %1352 = vmatmul.mubr.f32.gmra.mrb[0].mxu0 %v1128
  %v1353 = vpop.f32.mrb[0].mxu0
  %v1354 = vadd.f32 0.0, %v1353
  %v1355 = vpop.f32.mrb[0].mxu0
  %v1356 = vadd.f32 0.0, %v1355
  %1357 = vmatprep.mubr.f32.mxu0 %v1192
  %1358 = vmatmul.mubr.f32.gmra.mrb[0].mxu0 %v1130
  %v1359 = vpop.f32.mrb[0].mxu0
  %v1360 = vadd.f32 0.0, %v1359
  %v1361 = vpop.f32.mrb[0].mxu0
  %v1362 = vadd.f32 0.0, %v1361
  %1363 = vmatprep.mubr.f32.mxu0 %v1195
  %1364 = vmatmul.mubr.f32.gmra.mrb[0].mxu0 %v1132
  %v1365 = vpop.f32.mrb[0].mxu0
  %v1366 = vadd.f32 0.0, %v1365
  %v1367 = vpop.f32.mrb[0].mxu0
  %v1368 = vadd.f32 0.0, %v1367
  %1369 = vmatprep.mubr.f32.mxu0 %v1198
  %1370 = vmatmul.mubr.f32.gmra.mrb[0].mxu0 %v1134
  %v1371 = vpop.f32.mrb[0].mxu0
  %v1372 = vadd.f32 0.0, %v1371
  %v1373 = vpop.f32.mrb[0].mxu0
  %v1374 = vadd.f32 0.0, %v1373
  %1375 = vmatprep.mubr.f32.mxu0 %v1201
  %1376 = vmatmul.mubr.f32.gmra.mrb[0].mxu0 %v1136
  %v1377 = vpop.f32.mrb[0].mxu0
  %v1378 = vadd.f32 0.0, %v1377
  %v1379 = vpop.f32.mrb[0].mxu0
  %v1380 = vadd.f32 0.0, %v1379
  %1381 = vmatprep.mubr.f32.mxu0 %v1204
  %1382 = vmatmul.mubr.f32.gmra.mrb[0].mxu0 %v1138
  %v1383 = vpop.f32.mrb[0].mxu0
  %v1384 = vadd.f32 0.0, %v1383
  %v1385 = vpop.f32.mrb[0].mxu0
  %v1386 = vadd.f32 0.0, %v1385
  %1387 = vmatprep.mubr.f32.mxu0 %v1207
  %1388 = vmatmul.mubr.f32.gmra.mrb[0].mxu0 %v1140
  %v1389 = vpop.f32.mrb[0].mxu0
  %v1390 = vadd.f32 0.0, %v1389
  %v1391 = vpop.f32.mrb[0].mxu0
  %v1392 = vadd.f32 0.0, %v1391
  %1393 = vmatprep.mubr.f32.mxu0 %v1210
  %1394 = vmatmul.mubr.f32.gmra.mrb[0].mxu0 %v1142
  %v1395 = vpop.f32.mrb[0].mxu0
  %v1396 = vadd.f32 0.0, %v1395
  %v1397 = vpop.f32.mrb[0].mxu0
  %v1398 = vadd.f32 0.0, %v1397
  %1399 = vmatprep.mubr.f32.mxu0 %v1213
  %1400 = vmatmul.mubr.f32.gmra.mrb[0].mxu0 %v1144
  %v1401 = vpop.f32.mrb[0].mxu0
  %v1402 = vadd.f32 0.0, %v1401
  %v1403 = vpop.f32.mrb[0].mxu0
  %v1404 = vadd.f32 0.0, %v1403
  %1405 = vmatprep.mubr.f32.mxu0 %v1216
  %1406 = vmatmul.mubr.f32.gmra.mrb[0].mxu0 %v1146
  %v1407 = vpop.f32.mrb[0].mxu0
  %v1408 = vadd.f32 0.0, %v1407
  %v1409 = vpop.f32.mrb[0].mxu0
  %v1410 = vadd.f32 0.0, %v1409
  %1411 = vmatprep.mubr.f32.mxu0 %v1219
  %1412 = vmatmul.mubr.f32.gmra.mrb[0].mxu0 %v1148
  %v1413 = vpop.f32.mrb[0].mxu0
  %v1414 = vadd.f32 0.0, %v1413
  %v1415 = vpop.f32.mrb[0].mxu0
  %v1416 = vadd.f32 0.0, %v1415
  %1417 = vmatprep.mubr.f32.mxu0 %v1222
  %1418 = vmatmul.mubr.f32.gmra.mrb[0].mxu0 %v1150
  %v1419 = vpop.f32.mrb[0].mxu0
  %v1420 = vadd.f32 0.0, %v1419
  %v1421 = vpop.f32.mrb[0].mxu0
  %v1422 = vadd.f32 0.0, %v1421
  %1423 = vmatprep.mubr.f32.mxu0 %v1225
  %1424 = vmatmul.mubr.f32.gmra.mrb[0].mxu0 %v1152
  %v1425 = vpop.f32.mrb[0].mxu0
  %v1426 = vadd.f32 0.0, %v1425
  %v1427 = vpop.f32.mrb[0].mxu0
  %v1428 = vadd.f32 0.0, %v1427
  %1429 = vmatprep.mubr.f32.mxu0 %v1228
  %1430 = vmatmul.mubr.f32.gmra.mrb[0].mxu0 %v1154
  %v1431 = vpop.f32.mrb[0].mxu0
  %v1432 = vadd.f32 0.0, %v1431
  %v1433 = vpop.f32.mrb[0].mxu0
  %v1434 = vadd.f32 0.0, %v1433
  %1435 = vmatprep.mubr.f32.mxu0 %v1231
  %1436 = vmatmul.mubr.f32.gmra.mrb[0].mxu0 %v1156
  %v1437 = vpop.f32.mrb[0].mxu0
  %v1438 = vadd.f32 0.0, %v1437
  %v1439 = vpop.f32.mrb[0].mxu0
  %v1440 = vadd.f32 0.0, %v1439
  %1441 = vmatprep.mubr.f32.mxu0 %v1234
  %1442 = vmatmul.mubr.f32.gmra.mrb[0].mxu0 %v1158
  %v1443 = vpop.f32.mrb[0].mxu0
  %v1444 = vadd.f32 0.0, %v1443
  %v1445 = vpop.f32.mrb[0].mxu0
  %v1446 = vadd.f32 0.0, %v1445
  %1447 = vmatprep.mubr.f32.mxu0 %v1237
  %1448 = vmatmul.mubr.f32.gmra.mrb[0].mxu0 %v1160
  %v1449 = vpop.f32.mrb[0].mxu0
  %v1450 = vadd.f32 0.0, %v1449
  %v1451 = vpop.f32.mrb[0].mxu0
  %v1452 = vadd.f32 0.0, %v1451
  %1453 = vmatprep.mubr.f32.mxu0 %v1240
  %1454 = vmatmul.mubr.f32.gmra.mrb[0].mxu0 %v1162
  %v1455 = vpop.f32.mrb[0].mxu0
  %v1456 = vadd.f32 0.0, %v1455
  %v1457 = vpop.f32.mrb[0].mxu0
  %v1458 = vadd.f32 0.0, %v1457
  %1459 = vmatprep.mubr.f32.mxu0 %v1243
  %1460 = vmatmul.mubr.f32.gmra.mrb[0].mxu0 %v1164
  %v1461 = vpop.f32.mrb[0].mxu0
  %v1462 = vadd.f32 0.0, %v1461
  %v1463 = vpop.f32.mrb[0].mxu0
  %v1464 = vadd.f32 0.0, %v1463
  %1465 = vdwg.mxu0
  %1466 = vst [vmem:[%s4] sm:$0xff] %v1312
  %1467 = vst [vmem:[%s4 + $0x8] sm:$0xff] %v1314
  %1468 = vst [vmem:[%s4 + $0x10] sm:$0xff] %v1318
  %1469 = vst [vmem:[%s4 + $0x18] sm:$0xff] %v1320
  %1470 = vst [vmem:[%s4 + $0x20] sm:$0xff] %v1324
  %1471 = vst [vmem:[%s4 + $0x28] sm:$0xff] %v1326
  %1472 = vst [vmem:[%s4 + $0x30] sm:$0xff] %v1330
  %1473 = vst [vmem:[%s4 + $0x38] sm:$0xff] %v1332
  %1474 = vst [vmem:[%s4 + $0x40] sm:$0xff] %v1336
  %1475 = vst [vmem:[%s4 + $0x48] sm:$0xff] %v1338
  %1476 = vst [vmem:[%s4 + $0x50] sm:$0xff] %v1342
  %1477 = vst [vmem:[%s4 + $0x58] sm:$0xff] %v1344
  %1478 = vst [vmem:[%s4 + $0x60] sm:$0xff] %v1348
  %1479 = vst [vmem:[%s4 + $0x68] sm:$0xff] %v1350
  %1480 = vst [vmem:[%s4 + $0x70] sm:$0xff] %v1354
  %1481 = vst [vmem:[%s4 + $0x78] sm:$0xff] %v1356
  %1482 = vst [vmem:[%s4 + $0x80] sm:$0xff] %v1360
  %1483 = vst [vmem:[%s4 + $0x88] sm:$0xff] %v1362
  %1484 = vst [vmem:[%s4 + $0x90] sm:$0xff] %v1366
  %1485 = vst [vmem:[%s4 + $0x98] sm:$0xff] %v1368
  %1486 = vst [vmem:[%s4 + $0xa0] sm:$0xff] %v1372
  %1487 = vst [vmem:[%s4 + $0xa8] sm:$0xff] %v1374
  %1488 = vst [vmem:[%s4 + $0xb0] sm:$0xff] %v1378
  %1489 = vst [vmem:[%s4 + $0xb8] sm:$0xff] %v1380
  %1490 = vst [vmem:[%s4 + $0xc0] sm:$0xff] %v1384
  %1491 = vst [vmem:[%s4 + $0xc8] sm:$0xff] %v1386
  %1492 = vst [vmem:[%s4 + $0xd0] sm:$0xff] %v1390
  %1493 = vst [vmem:[%s4 + $0xd8] sm:$0xff] %v1392
  %1494 = vst [vmem:[%s4 + $0xe0] sm:$0xff] %v1396
  %1495 = vst [vmem:[%s4 + $0xe8] sm:$0xff] %v1398
  %1496 = vst [vmem:[%s4 + $0xf0] sm:$0xff] %v1402
  %1497 = vst [vmem:[%s4 + $0xf8] sm:$0xff] %v1404
  %1498 = vst [vmem:[%s4 + $0x100] sm:$0xff] %v1408
  %1499 = vst [vmem:[%s4 + $0x108] sm:$0xff] %v1410
  %1500 = vst [vmem:[%s4 + $0x110] sm:$0xff] %v1414
  %1501 = vst [vmem:[%s4 + $0x118] sm:$0xff] %v1416
  %1502 = vst [vmem:[%s4 + $0x120] sm:$0xff] %v1420
  %1503 = vst [vmem:[%s4 + $0x128] sm:$0xff] %v1422
  %1504 = vst [vmem:[%s4 + $0x130] sm:$0xff] %v1426
  %1505 = vst [vmem:[%s4 + $0x138] sm:$0xff] %v1428
  %1506 = vst [vmem:[%s4 + $0x140] sm:$0xff] %v1432
  %1507 = vst [vmem:[%s4 + $0x148] sm:$0xff] %v1434
  %1508 = vst [vmem:[%s4 + $0x150] sm:$0xff] %v1438
  %1509 = vst [vmem:[%s4 + $0x158] sm:$0xff] %v1440
  %1510 = vst [vmem:[%s4 + $0x160] sm:$0xff] %v1444
  %1511 = vst [vmem:[%s4 + $0x168] sm:$0xff] %v1446
  %1512 = vst [vmem:[%s4 + $0x170] sm:$0xff] %v1450
  %1513 = vst [vmem:[%s4 + $0x178] sm:$0xff] %v1452
  %1514 = vst [vmem:[%s4 + $0x180] sm:$0xff] %v1456
  %1515 = vst [vmem:[%s4 + $0x188] sm:$0xff] %v1458
  %1516 = vst [vmem:[%s4 + $0x190] sm:$0xff] %v1462
  %1517 = vst [vmem:[%s4 + $0x198] sm:$0xff] %v1464
  // Predicated region
  $region18: #{fused_forward.1} parent=0 // pred_check
    _
  $region19: #{fused_forward.1} parent=0 // pred_check_branch
    %1519 = sbr.rel (0) target = $region21
  $region20: #{fused_forward.1} parent=0 // pred_region
    _
  $region21: #{fused_forward.1} parent=0 // pred_fallthru
    _
  // Predicated region
  $region22: #{fused_forward.1} parent=0 // pred_check
    _
  $region23: #{fused_forward.1} parent=0 // pred_check_branch
    %1521 = sbr.rel (0) target = $region25
  $region24: #{fused_forward.1} parent=0 // pred_region
    _
  $region25: #{fused_forward.1} parent=0 // pred_fallthru
    _

</llo_original>
